<compile_context>
chip_gen: v6e
topology: v6e:2x2x1
jax: 0.10.0
libtpu: 0.0.40
codegen_flags: <defaults>
</compile_context>

<pallas_src>
import functools

import jax
import jax.numpy as jnp
import numpy as np
from jax.experimental import pallas as pl
from jax.experimental.pallas import tpu as pltpu


# ---------------------------------------------------------------------------
# Boundary masks for a 3x3 "same" conv on a flattened (H*W) lane axis.
# mask[dy*3+dx, 0, h*W+w] = 1 iff the source pixel (h+dy-1, w+dx-1) is
# in-bounds.  Applied to the rolled activations, this zeroes exactly the
# pixels that wrapped across a row / image boundary.
# ---------------------------------------------------------------------------
@functools.lru_cache(maxsize=None)
def _make_tap_masks(H, W):
    HW = H * W
    h = np.arange(HW) // W
    w = np.arange(HW) % W
    m = np.zeros((9, 1, HW), np.float32)
    for dy in range(3):
        for dx in range(3):
            oy, ox = dy - 1, dx - 1
            ok = (h + oy >= 0) & (h + oy < H) & (w + ox >= 0) & (w + ox < W)
            m[dy * 3 + dx, 0] = ok
    return m


# ---------------------------------------------------------------------------
# Fused ESPSerial kernel: cv1(1x1) -> 3x3 -> 3x3 -> cv2(1x1), all in VMEM.
# Activations live as (C, HW): channels on sublanes, pixels on lanes.
# ---------------------------------------------------------------------------
def _make_esp_kernel(H, W):
    HW = H * W

    def silu(v):
        # exp and the approximate reciprocal both go to the EUP slot.
        return v * pl.reciprocal(1.0 + jnp.exp(-v), approx=True)

    def kernel(x_ref, mask_ref, w1_ref, b1_ref, w2_ref, b2_ref,
               w3_ref, b3_ref, w4_ref, b4_ref, o_ref):
        f32 = jnp.float32
        bf16 = jnp.bfloat16

        def conv3x3(y, w_ref, b_ref):
            # y: (Cin_p, HW) f32.  Build the 9 shifted+masked taps with XLU
            # rolls, stack along sublanes into a (9*Cin_p, HW) im2col buffer,
            # then one big-K MXU contraction in bf16 with f32 accumulation.
            parts = []
            for dy in range(3):
                for dx in range(3):
                    s = dy * 3 + dx
                    off = (dy - 1) * W + (dx - 1)
                    if off:
                        shifted = pltpu.roll(y, shift=(-off) % HW, axis=1)
                    else:
                        shifted = y
                    parts.append(shifted * mask_ref[s])   # zero wrapped/OOB pixels
            im2col = jnp.concatenate(parts, axis=0).astype(bf16)   # (9*Cin_p, HW)
            acc = jnp.dot(w_ref[...], im2col, preferred_element_type=f32)
            return silu(acc + b_ref[...])

        x = x_ref[0].astype(bf16)                                       # (C1, HW)
        # cv1 : 1x1 conv + SiLU            -> (2c_p, HW)
        y = silu(jnp.dot(w1_ref[...], x, preferred_element_type=f32) + b1_ref[...])
        # m[0].cv1 : 3x3 conv + SiLU       -> (c_p, HW)
        y = conv3x3(y, w2_ref, b2_ref)
        # m[0].cv2 : 3x3 conv + SiLU       -> (c_p, HW)   (no shortcut: 2c != c)
        y = conv3x3(y, w3_ref, b3_ref)
        # cv2 : 1x1 conv + SiLU            -> (c2_p, HW)
        y = silu(jnp.dot(w4_ref[...], y.astype(bf16),
                         preferred_element_type=f32) + b4_ref[...])
        o_ref[0] = y.astype(o_ref.dtype)

    return kernel


# ---------------------------------------------------------------------------
# Parameter construction (deterministic) with BN folded into conv
# ---------------------------------------------------------------------------
def _fold_bn(w_hwio, gamma, beta, mean, var, eps=1e-3):
    scale = gamma / jnp.sqrt(var + eps)          # (Cout,)
    w_eff = w_hwio * scale                       # broadcast over last dim (Cout)
    b_eff = beta - mean * scale
    return w_eff, b_eff


def _make_conv_params(key, kh, kw, cin, cout):
    kw_, kg, kb, km, kv = jax.random.split(key, 5)
    w = jax.random.normal(kw_, (kh, kw, cin, cout), jnp.float32) * 0.1
    gamma = 1.0 + 0.1 * jax.random.normal(kg, (cout,), jnp.float32)
    beta = 0.1 * jax.random.normal(kb, (cout,), jnp.float32)
    mean = 0.1 * jax.random.normal(km, (cout,), jnp.float32)
    var = 1.0 + 0.1 * jax.random.uniform(kv, (cout,), jnp.float32)
    return _fold_bn(w, gamma, beta, mean, var)


def make_esp_serial_params(key, c1, c2, e=0.5):
    c = int(c2 * e)
    k1, k2, k3, k4 = jax.random.split(key, 4)
    p = {}
    p["cv1_w"], p["cv1_b"] = _make_conv_params(k1, 1, 1, c1, 2 * c)      # 1x1
    p["m_cv1_w"], p["m_cv1_b"] = _make_conv_params(k2, 3, 3, 2 * c, c)   # 3x3
    p["m_cv2_w"], p["m_cv2_b"] = _make_conv_params(k3, 3, 3, c, c)       # 3x3
    p["cv2_w"], p["cv2_b"] = _make_conv_params(k4, 1, 1, c, c2)          # 1x1
    return p


# ---------------------------------------------------------------------------
# Weight repacking for the (C, HW) lane-dense layout.  Channel dims are
# zero-padded to multiples of _PAD so MXU pushes have aligned live rows;
# weights are stored as bf16 (MXU operand dtype), biases stay f32.
# ---------------------------------------------------------------------------
_PAD = 8


def _ceil_to(v, m):
    return ((v + m - 1) // m) * m


def _pack_1x1(w_hwio, cin_p, cout_p):
    cin, cout = w_hwio.shape[2], w_hwio.shape[3]
    wp = jnp.zeros((cout_p, cin_p), jnp.float32)
    wp = wp.at[:cout, :cin].set(w_hwio[0, 0].T)
    return wp.astype(jnp.bfloat16)


def _pack_3x3(w_hwio, cin_p, cout_p):
    kh, kw, cin, cout = w_hwio.shape
    wp = jnp.zeros((kh, kw, cin_p, cout_p), jnp.float32)
    wp = wp.at[:, :, :cin, :cout].set(w_hwio)
    # -> (cout_p, 9*cin_p): column index = (dy*3+dx)*cin_p + ci  (matches im2col)
    wp = jnp.transpose(wp, (3, 0, 1, 2)).reshape(cout_p, kh * kw * cin_p)
    return wp.astype(jnp.bfloat16)


def _pack_bias(b, cout_p):
    bp = jnp.zeros((cout_p, 1), jnp.float32)
    return bp.at[: b.shape[0], 0].set(b)


# ---------------------------------------------------------------------------
# ESPSerial forward (n=1).  Input/output are NCHW to match the PyTorch module.
# ---------------------------------------------------------------------------
@jax.jit
def esp_serial_forward(x_nchw, params):
    N, C1, H, W = x_nchw.shape
    HW = H * W
    two_c = params["cv1_w"].shape[-1]
    c = two_c // 2
    c2 = params["cv2_w"].shape[-1]

    two_cp = _ceil_to(two_c, _PAD)
    cp = _ceil_to(c, _PAD)
    c2p = _ceil_to(c2, _PAD)

    # Free contiguous reshape: NCHW -> (N, C, H*W).  H*W is the lane axis.
    x = x_nchw.reshape(N, C1, HW)

    w1 = _pack_1x1(params["cv1_w"], C1, two_cp)          # (2c_p, c1)   bf16
    b1 = _pack_bias(params["cv1_b"], two_cp)             # (2c_p, 1)    f32
    w2 = _pack_3x3(params["m_cv1_w"], two_cp, cp)        # (c_p, 9*2c_p)
    b2 = _pack_bias(params["m_cv1_b"], cp)
    w3 = _pack_3x3(params["m_cv2_w"], cp, cp)            # (c_p, 9*c_p)
    b3 = _pack_bias(params["m_cv2_b"], cp)
    w4 = _pack_1x1(params["cv2_w"], cp, c2p)             # (c2_p, c_p)
    b4 = _pack_bias(params["cv2_b"], c2p)

    masks = jnp.asarray(_make_tap_masks(H, W))           # (9, 1, HW), ~9 KiB

    # Grid-invariant operands: constant index_map + full block -> DMA'd once,
    # not re-fetched per grid step.
    const2 = lambda n: (0, 0)
    const3 = lambda n: (0, 0, 0)

    out = pl.pallas_call(
        _make_esp_kernel(H, W),
        out_shape=jax.ShapeDtypeStruct((N, c2p, HW), jnp.float32),
        grid=(N,),
        in_specs=[
            pl.BlockSpec((1, C1, HW), lambda n: (n, 0, 0)),   # x (per image)
            pl.BlockSpec((9, 1, HW), const3),                 # boundary masks
            pl.BlockSpec((two_cp, C1), const2),               # cv1 weight
            pl.BlockSpec((two_cp, 1), const2),                # cv1 bias
            pl.BlockSpec((cp, 9 * two_cp), const2),           # m.cv1 weight (im2col)
            pl.BlockSpec((cp, 1), const2),                    # m.cv1 bias
            pl.BlockSpec((cp, 9 * cp), const2),               # m.cv2 weight (im2col)
            pl.BlockSpec((cp, 1), const2),                    # m.cv2 bias
            pl.BlockSpec((c2p, cp), const2),                  # cv2 weight
            pl.BlockSpec((c2p, 1), const2),                   # cv2 bias
        ],
        out_specs=pl.BlockSpec((1, c2p, HW), lambda n: (n, 0, 0)),
        compiler_params=pltpu.CompilerParams(
            dimension_semantics=("parallel",),
            vmem_limit_bytes=32 * 1024 * 1024),
    )(x, masks, w1, b1, w2, b2, w3, b3, w4, b4)

    return out[:, :c2].reshape(N, c2, H, W)


# ---------------------------------------------------------------------------
# Pure-JAX reference (lax.conv, full f32 precision) for correctness check
# ---------------------------------------------------------------------------
def _ref_conv(x, w, b, padding):
    y = jax.lax.conv_general_dilated(
        x, w, (1, 1), padding,
        dimension_numbers=("NCHW", "HWIO", "NCHW"),
        precision=jax.lax.Precision.HIGHEST)
    y = y + b.reshape(1, -1, 1, 1)
    return y * jax.nn.sigmoid(y)


def esp_serial_reference(x_nchw, params):
    y = _ref_conv(x_nchw, params["cv1_w"], params["cv1_b"], "VALID")
    y = _ref_conv(y, params["m_cv1_w"], params["m_cv1_b"], "SAME")
    y = _ref_conv(y, params["m_cv2_w"], params["m_cv2_b"], "SAME")
    y = _ref_conv(y, params["cv2_w"], params["cv2_b"], "VALID")
    return y


if __name__ == "__main__":
    # Small deterministic configuration: ESPSerial(c1=4, c2=8, n=1, e=0.5)
    N, C1, H, W = 2, 4, 16, 16
    C2 = 8

    key = jax.random.PRNGKey(0)
    kx, kp = jax.random.split(key)
    x = jax.random.normal(kx, (N, C1, H, W), jnp.float32)        # NCHW like PyTorch
    params = make_esp_serial_params(kp, C1, C2, e=0.5)

    out = jax.block_until_ready(esp_serial_forward(x, params))
    assert out.shape == (N, C2, H, W), out.shape

    ref = jax.block_until_ready(esp_serial_reference(x, params))
    err = jnp.abs(out - ref)
    # Tolerance relaxed vs the all-f32 version: MXU operands are bf16 now.
    tol = 3e-2 + 3e-2 * jnp.abs(ref)
    if bool(jnp.any(err > tol)):
        raise AssertionError(
            f"Pallas output mismatch vs reference: max abs err {float(jnp.max(err))}")

    print("KERNEL_OK")
</pallas_src>

<mosaic_0001>
module attributes {stable_mosaic.version = 11 : i64} {
  func.func @kernel(%arg0: i32, %arg1: memref<1x4x256xf32, #tpu.memory_space<vmem>>, %arg2: memref<9x1x256xf32, #tpu.memory_space<vmem>>, %arg3: memref<8x4xbf16, #tpu.memory_space<vmem>>, %arg4: memref<8x1xf32, #tpu.memory_space<vmem>>, %arg5: memref<8x72xbf16, #tpu.memory_space<vmem>>, %arg6: memref<8x1xf32, #tpu.memory_space<vmem>>, %arg7: memref<8x72xbf16, #tpu.memory_space<vmem>>, %arg8: memref<8x1xf32, #tpu.memory_space<vmem>>, %arg9: memref<8x8xbf16, #tpu.memory_space<vmem>>, %arg10: memref<8x1xf32, #tpu.memory_space<vmem>>, %arg11: memref<1x8x256xf32, #tpu.memory_space<vmem>>) attributes {dimension_semantics = [#tpu.dimension_semantics<parallel>], iteration_bounds = array<i64: 2>, scalar_prefetch = 0 : i64, scratch_operands = 0 : i64, tpu.core_type = #tpu.core_type<tc>, window_params = [{transform_indices = @transform_0, window_bounds = array<i64: 1, 4, 256>}, {pipeline_mode = #tpu.pipeline_mode<synchronous>, transform_indices = @transform_1, window_bounds = array<i64: 9, 1, 256>}, {pipeline_mode = #tpu.pipeline_mode<synchronous>, transform_indices = @transform_2, window_bounds = array<i64: 8, 4>}, {pipeline_mode = #tpu.pipeline_mode<synchronous>, transform_indices = @transform_3, window_bounds = array<i64: 8, 1>}, {pipeline_mode = #tpu.pipeline_mode<synchronous>, transform_indices = @transform_4, window_bounds = array<i64: 8, 72>}, {pipeline_mode = #tpu.pipeline_mode<synchronous>, transform_indices = @transform_5, window_bounds = array<i64: 8, 1>}, {pipeline_mode = #tpu.pipeline_mode<synchronous>, transform_indices = @transform_6, window_bounds = array<i64: 8, 72>}, {pipeline_mode = #tpu.pipeline_mode<synchronous>, transform_indices = @transform_7, window_bounds = array<i64: 8, 1>}, {pipeline_mode = #tpu.pipeline_mode<synchronous>, transform_indices = @transform_8, window_bounds = array<i64: 8, 8>}, {pipeline_mode = #tpu.pipeline_mode<synchronous>, transform_indices = @transform_9, window_bounds = array<i64: 8, 1>}, {transform_indices = @transform_10, window_bounds = array<i64: 1, 8, 256>}]} {
    %c0 = arith.constant 0 : index
    %c0_0 = arith.constant 0 : index
    %c0_1 = arith.constant 0 : index
    %0 = vector.load %arg1[%c0, %c0_0, %c0_1] : memref<1x4x256xf32, #tpu.memory_space<vmem>>, vector<1x4x256xf32>
    %1 = vector.shape_cast %0 : vector<1x4x256xf32> to vector<4x256xf32>
    %2 = arith.truncf %1 : vector<4x256xf32> to vector<4x256xbf16>
    %c0_2 = arith.constant 0 : index
    %c0_3 = arith.constant 0 : index
    %3 = vector.load %arg3[%c0_2, %c0_3] : memref<8x4xbf16, #tpu.memory_space<vmem>>, vector<8x4xbf16>
    %cst = arith.constant dense<0.000000e+00> : vector<8x256xf32>
    %4 = tpu.matmul %3, %2, %cst {dimension_numbers = #tpu.dot_dimension_numbers<[1], [0], [0], [1], [0, 0, 1, 1], [], []>} : vector<8x4xbf16>, vector<4x256xbf16>, vector<8x256xf32> -> vector<8x256xf32>
    %c0_4 = arith.constant 0 : index
    %c0_5 = arith.constant 0 : index
    %5 = vector.load %arg4[%c0_4, %c0_5] : memref<8x1xf32, #tpu.memory_space<vmem>>, vector<8x1xf32>
    %6 = vector.broadcast %5 : vector<8x1xf32> to vector<8x256xf32>
    %7 = arith.addf %4, %6 : vector<8x256xf32>
    %cst_6 = arith.constant 0.000000e+00 : f32
    %8 = vector.broadcast %cst_6 : f32 to vector<8x256xf32>
    %9 = arith.subf %8, %7 : vector<8x256xf32>
    %10 = math.exp %9 : vector<8x256xf32>
    %cst_7 = arith.constant 1.000000e+00 : f32
    %11 = vector.broadcast %cst_7 : f32 to vector<8x256xf32>
    %12 = arith.addf %11, %10 : vector<8x256xf32>
    %13 = tpu.reciprocal %12 {approx = true} : vector<8x256xf32> -> vector<8x256xf32>
    %14 = arith.mulf %7, %13 : vector<8x256xf32>
    %c17_i32 = arith.constant 17 : i32
    %15 = tpu.dynamic_rotate %14 by %c17_i32 dim 1 : vector<8x256xf32>, i32 -> vector<8x256xf32>
    %c0_8 = arith.constant 0 : index
    %c0_9 = arith.constant 0 : index
    %c0_10 = arith.constant 0 : index
    %16 = vector.load %arg2[%c0_8, %c0_9, %c0_10] : memref<9x1x256xf32, #tpu.memory_space<vmem>>, vector<1x1x256xf32>
    %17 = vector.shape_cast %16 : vector<1x1x256xf32> to vector<1x256xf32>
    %18 = vector.broadcast %17 : vector<1x256xf32> to vector<8x256xf32>
    %19 = arith.mulf %15, %18 : vector<8x256xf32>
    %c16_i32 = arith.constant 16 : i32
    %20 = tpu.dynamic_rotate %14 by %c16_i32 dim 1 : vector<8x256xf32>, i32 -> vector<8x256xf32>
    %c1 = arith.constant 1 : index
    %c0_11 = arith.constant 0 : index
    %c0_12 = arith.constant 0 : index
    %21 = vector.load %arg2[%c1, %c0_11, %c0_12] : memref<9x1x256xf32, #tpu.memory_space<vmem>>, vector<1x1x256xf32>
    %22 = vector.shape_cast %21 : vector<1x1x256xf32> to vector<1x256xf32>
    %23 = vector.broadcast %22 : vector<1x256xf32> to vector<8x256xf32>
    %24 = arith.mulf %20, %23 : vector<8x256xf32>
    %c15_i32 = arith.constant 15 : i32
    %25 = tpu.dynamic_rotate %14 by %c15_i32 dim 1 : vector<8x256xf32>, i32 -> vector<8x256xf32>
    %c2 = arith.constant 2 : index
    %c0_13 = arith.constant 0 : index
    %c0_14 = arith.constant 0 : index
    %26 = vector.load %arg2[%c2, %c0_13, %c0_14] : memref<9x1x256xf32, #tpu.memory_space<vmem>>, vector<1x1x256xf32>
    %27 = vector.shape_cast %26 : vector<1x1x256xf32> to vector<1x256xf32>
    %28 = vector.broadcast %27 : vector<1x256xf32> to vector<8x256xf32>
    %29 = arith.mulf %25, %28 : vector<8x256xf32>
    %c1_i32 = arith.constant 1 : i32
    %30 = tpu.dynamic_rotate %14 by %c1_i32 dim 1 : vector<8x256xf32>, i32 -> vector<8x256xf32>
    %c3 = arith.constant 3 : index
    %c0_15 = arith.constant 0 : index
    %c0_16 = arith.constant 0 : index
    %31 = vector.load %arg2[%c3, %c0_15, %c0_16] : memref<9x1x256xf32, #tpu.memory_space<vmem>>, vector<1x1x256xf32>
    %32 = vector.shape_cast %31 : vector<1x1x256xf32> to vector<1x256xf32>
    %33 = vector.broadcast %32 : vector<1x256xf32> to vector<8x256xf32>
    %34 = arith.mulf %30, %33 : vector<8x256xf32>
    %c4 = arith.constant 4 : index
    %c0_17 = arith.constant 0 : index
    %c0_18 = arith.constant 0 : index
    %35 = vector.load %arg2[%c4, %c0_17, %c0_18] : memref<9x1x256xf32, #tpu.memory_space<vmem>>, vector<1x1x256xf32>
    %36 = vector.shape_cast %35 : vector<1x1x256xf32> to vector<1x256xf32>
    %37 = vector.broadcast %36 : vector<1x256xf32> to vector<8x256xf32>
    %38 = arith.mulf %14, %37 : vector<8x256xf32>
    %c255_i32 = arith.constant 255 : i32
    %39 = tpu.dynamic_rotate %14 by %c255_i32 dim 1 : vector<8x256xf32>, i32 -> vector<8x256xf32>
    %c5 = arith.constant 5 : index
    %c0_19 = arith.constant 0 : index
    %c0_20 = arith.constant 0 : index
    %40 = vector.load %arg2[%c5, %c0_19, %c0_20] : memref<9x1x256xf32, #tpu.memory_space<vmem>>, vector<1x1x256xf32>
    %41 = vector.shape_cast %40 : vector<1x1x256xf32> to vector<1x256xf32>
    %42 = vector.broadcast %41 : vector<1x256xf32> to vector<8x256xf32>
    %43 = arith.mulf %39, %42 : vector<8x256xf32>
    %c241_i32 = arith.constant 241 : i32
    %44 = tpu.dynamic_rotate %14 by %c241_i32 dim 1 : vector<8x256xf32>, i32 -> vector<8x256xf32>
    %c6 = arith.constant 6 : index
    %c0_21 = arith.constant 0 : index
    %c0_22 = arith.constant 0 : index
    %45 = vector.load %arg2[%c6, %c0_21, %c0_22] : memref<9x1x256xf32, #tpu.memory_space<vmem>>, vector<1x1x256xf32>
    %46 = vector.shape_cast %45 : vector<1x1x256xf32> to vector<1x256xf32>
    %47 = vector.broadcast %46 : vector<1x256xf32> to vector<8x256xf32>
    %48 = arith.mulf %44, %47 : vector<8x256xf32>
    %c240_i32 = arith.constant 240 : i32
    %49 = tpu.dynamic_rotate %14 by %c240_i32 dim 1 : vector<8x256xf32>, i32 -> vector<8x256xf32>
    %c7 = arith.constant 7 : index
    %c0_23 = arith.constant 0 : index
    %c0_24 = arith.constant 0 : index
    %50 = vector.load %arg2[%c7, %c0_23, %c0_24] : memref<9x1x256xf32, #tpu.memory_space<vmem>>, vector<1x1x256xf32>
    %51 = vector.shape_cast %50 : vector<1x1x256xf32> to vector<1x256xf32>
    %52 = vector.broadcast %51 : vector<1x256xf32> to vector<8x256xf32>
    %53 = arith.mulf %49, %52 : vector<8x256xf32>
    %c239_i32 = arith.constant 239 : i32
    %54 = tpu.dynamic_rotate %14 by %c239_i32 dim 1 : vector<8x256xf32>, i32 -> vector<8x256xf32>
    %c8 = arith.constant 8 : index
    %c0_25 = arith.constant 0 : index
    %c0_26 = arith.constant 0 : index
    %55 = vector.load %arg2[%c8, %c0_25, %c0_26] : memref<9x1x256xf32, #tpu.memory_space<vmem>>, vector<1x1x256xf32>
    %56 = vector.shape_cast %55 : vector<1x1x256xf32> to vector<1x256xf32>
    %57 = vector.broadcast %56 : vector<1x256xf32> to vector<8x256xf32>
    %58 = arith.mulf %54, %57 : vector<8x256xf32>
    %59 = tpu.concatenate %19, %24, %29, %34, %38, %43, %48, %53, %58 in 0 : vector<8x256xf32>, vector<8x256xf32>, vector<8x256xf32>, vector<8x256xf32>, vector<8x256xf32>, vector<8x256xf32>, vector<8x256xf32>, vector<8x256xf32>, vector<8x256xf32> -> vector<72x256xf32>
    %60 = arith.truncf %59 : vector<72x256xf32> to vector<72x256xbf16>
    %c0_27 = arith.constant 0 : index
    %c0_28 = arith.constant 0 : index
    %61 = vector.load %arg5[%c0_27, %c0_28] : memref<8x72xbf16, #tpu.memory_space<vmem>>, vector<8x72xbf16>
    %cst_29 = arith.constant dense<0.000000e+00> : vector<8x256xf32>
    %62 = tpu.matmul %61, %60, %cst_29 {dimension_numbers = #tpu.dot_dimension_numbers<[1], [0], [0], [1], [0, 0, 1, 1], [], []>} : vector<8x72xbf16>, vector<72x256xbf16>, vector<8x256xf32> -> vector<8x256xf32>
    %c0_30 = arith.constant 0 : index
    %c0_31 = arith.constant 0 : index
    %63 = vector.load %arg6[%c0_30, %c0_31] : memref<8x1xf32, #tpu.memory_space<vmem>>, vector<8x1xf32>
    %64 = vector.broadcast %63 : vector<8x1xf32> to vector<8x256xf32>
    %65 = arith.addf %62, %64 : vector<8x256xf32>
    %cst_32 = arith.constant 0.000000e+00 : f32
    %66 = vector.broadcast %cst_32 : f32 to vector<8x256xf32>
    %67 = arith.subf %66, %65 : vector<8x256xf32>
    %68 = math.exp %67 : vector<8x256xf32>
    %cst_33 = arith.constant 1.000000e+00 : f32
    %69 = vector.broadcast %cst_33 : f32 to vector<8x256xf32>
    %70 = arith.addf %69, %68 : vector<8x256xf32>
    %71 = tpu.reciprocal %70 {approx = true} : vector<8x256xf32> -> vector<8x256xf32>
    %72 = arith.mulf %65, %71 : vector<8x256xf32>
    %c17_i32_34 = arith.constant 17 : i32
    %73 = tpu.dynamic_rotate %72 by %c17_i32_34 dim 1 : vector<8x256xf32>, i32 -> vector<8x256xf32>
    %c0_35 = arith.constant 0 : index
    %c0_36 = arith.constant 0 : index
    %c0_37 = arith.constant 0 : index
    %74 = vector.load %arg2[%c0_35, %c0_36, %c0_37] : memref<9x1x256xf32, #tpu.memory_space<vmem>>, vector<1x1x256xf32>
    %75 = vector.shape_cast %74 : vector<1x1x256xf32> to vector<1x256xf32>
    %76 = vector.broadcast %75 : vector<1x256xf32> to vector<8x256xf32>
    %77 = arith.mulf %73, %76 : vector<8x256xf32>
    %c16_i32_38 = arith.constant 16 : i32
    %78 = tpu.dynamic_rotate %72 by %c16_i32_38 dim 1 : vector<8x256xf32>, i32 -> vector<8x256xf32>
    %c1_39 = arith.constant 1 : index
    %c0_40 = arith.constant 0 : index
    %c0_41 = arith.constant 0 : index
    %79 = vector.load %arg2[%c1_39, %c0_40, %c0_41] : memref<9x1x256xf32, #tpu.memory_space<vmem>>, vector<1x1x256xf32>
    %80 = vector.shape_cast %79 : vector<1x1x256xf32> to vector<1x256xf32>
    %81 = vector.broadcast %80 : vector<1x256xf32> to vector<8x256xf32>
    %82 = arith.mulf %78, %81 : vector<8x256xf32>
    %c15_i32_42 = arith.constant 15 : i32
    %83 = tpu.dynamic_rotate %72 by %c15_i32_42 dim 1 : vector<8x256xf32>, i32 -> vector<8x256xf32>
    %c2_43 = arith.constant 2 : index
    %c0_44 = arith.constant 0 : index
    %c0_45 = arith.constant 0 : index
    %84 = vector.load %arg2[%c2_43, %c0_44, %c0_45] : memref<9x1x256xf32, #tpu.memory_space<vmem>>, vector<1x1x256xf32>
    %85 = vector.shape_cast %84 : vector<1x1x256xf32> to vector<1x256xf32>
    %86 = vector.broadcast %85 : vector<1x256xf32> to vector<8x256xf32>
    %87 = arith.mulf %83, %86 : vector<8x256xf32>
    %c1_i32_46 = arith.constant 1 : i32
    %88 = tpu.dynamic_rotate %72 by %c1_i32_46 dim 1 : vector<8x256xf32>, i32 -> vector<8x256xf32>
    %c3_47 = arith.constant 3 : index
    %c0_48 = arith.constant 0 : index
    %c0_49 = arith.constant 0 : index
    %89 = vector.load %arg2[%c3_47, %c0_48, %c0_49] : memref<9x1x256xf32, #tpu.memory_space<vmem>>, vector<1x1x256xf32>
    %90 = vector.shape_cast %89 : vector<1x1x256xf32> to vector<1x256xf32>
    %91 = vector.broadcast %90 : vector<1x256xf32> to vector<8x256xf32>
    %92 = arith.mulf %88, %91 : vector<8x256xf32>
    %c4_50 = arith.constant 4 : index
    %c0_51 = arith.constant 0 : index
    %c0_52 = arith.constant 0 : index
    %93 = vector.load %arg2[%c4_50, %c0_51, %c0_52] : memref<9x1x256xf32, #tpu.memory_space<vmem>>, vector<1x1x256xf32>
    %94 = vector.shape_cast %93 : vector<1x1x256xf32> to vector<1x256xf32>
    %95 = vector.broadcast %94 : vector<1x256xf32> to vector<8x256xf32>
    %96 = arith.mulf %72, %95 : vector<8x256xf32>
    %c255_i32_53 = arith.constant 255 : i32
    %97 = tpu.dynamic_rotate %72 by %c255_i32_53 dim 1 : vector<8x256xf32>, i32 -> vector<8x256xf32>
    %c5_54 = arith.constant 5 : index
    %c0_55 = arith.constant 0 : index
    %c0_56 = arith.constant 0 : index
    %98 = vector.load %arg2[%c5_54, %c0_55, %c0_56] : memref<9x1x256xf32, #tpu.memory_space<vmem>>, vector<1x1x256xf32>
    %99 = vector.shape_cast %98 : vector<1x1x256xf32> to vector<1x256xf32>
    %100 = vector.broadcast %99 : vector<1x256xf32> to vector<8x256xf32>
    %101 = arith.mulf %97, %100 : vector<8x256xf32>
    %c241_i32_57 = arith.constant 241 : i32
    %102 = tpu.dynamic_rotate %72 by %c241_i32_57 dim 1 : vector<8x256xf32>, i32 -> vector<8x256xf32>
    %c6_58 = arith.constant 6 : index
    %c0_59 = arith.constant 0 : index
    %c0_60 = arith.constant 0 : index
    %103 = vector.load %arg2[%c6_58, %c0_59, %c0_60] : memref<9x1x256xf32, #tpu.memory_space<vmem>>, vector<1x1x256xf32>
    %104 = vector.shape_cast %103 : vector<1x1x256xf32> to vector<1x256xf32>
    %105 = vector.broadcast %104 : vector<1x256xf32> to vector<8x256xf32>
    %106 = arith.mulf %102, %105 : vector<8x256xf32>
    %c240_i32_61 = arith.constant 240 : i32
    %107 = tpu.dynamic_rotate %72 by %c240_i32_61 dim 1 : vector<8x256xf32>, i32 -> vector<8x256xf32>
    %c7_62 = arith.constant 7 : index
    %c0_63 = arith.constant 0 : index
    %c0_64 = arith.constant 0 : index
    %108 = vector.load %arg2[%c7_62, %c0_63, %c0_64] : memref<9x1x256xf32, #tpu.memory_space<vmem>>, vector<1x1x256xf32>
    %109 = vector.shape_cast %108 : vector<1x1x256xf32> to vector<1x256xf32>
    %110 = vector.broadcast %109 : vector<1x256xf32> to vector<8x256xf32>
    %111 = arith.mulf %107, %110 : vector<8x256xf32>
    %c239_i32_65 = arith.constant 239 : i32
    %112 = tpu.dynamic_rotate %72 by %c239_i32_65 dim 1 : vector<8x256xf32>, i32 -> vector<8x256xf32>
    %c8_66 = arith.constant 8 : index
    %c0_67 = arith.constant 0 : index
    %c0_68 = arith.constant 0 : index
    %113 = vector.load %arg2[%c8_66, %c0_67, %c0_68] : memref<9x1x256xf32, #tpu.memory_space<vmem>>, vector<1x1x256xf32>
    %114 = vector.shape_cast %113 : vector<1x1x256xf32> to vector<1x256xf32>
    %115 = vector.broadcast %114 : vector<1x256xf32> to vector<8x256xf32>
    %116 = arith.mulf %112, %115 : vector<8x256xf32>
    %117 = tpu.concatenate %77, %82, %87, %92, %96, %101, %106, %111, %116 in 0 : vector<8x256xf32>, vector<8x256xf32>, vector<8x256xf32>, vector<8x256xf32>, vector<8x256xf32>, vector<8x256xf32>, vector<8x256xf32>, vector<8x256xf32>, vector<8x256xf32> -> vector<72x256xf32>
    %118 = arith.truncf %117 : vector<72x256xf32> to vector<72x256xbf16>
    %c0_69 = arith.constant 0 : index
    %c0_70 = arith.constant 0 : index
    %119 = vector.load %arg7[%c0_69, %c0_70] : memref<8x72xbf16, #tpu.memory_space<vmem>>, vector<8x72xbf16>
    %cst_71 = arith.constant dense<0.000000e+00> : vector<8x256xf32>
    %120 = tpu.matmul %119, %118, %cst_71 {dimension_numbers = #tpu.dot_dimension_numbers<[1], [0], [0], [1], [0, 0, 1, 1], [], []>} : vector<8x72xbf16>, vector<72x256xbf16>, vector<8x256xf32> -> vector<8x256xf32>
    %c0_72 = arith.constant 0 : index
    %c0_73 = arith.constant 0 : index
    %121 = vector.load %arg8[%c0_72, %c0_73] : memref<8x1xf32, #tpu.memory_space<vmem>>, vector<8x1xf32>
    %122 = vector.broadcast %121 : vector<8x1xf32> to vector<8x256xf32>
    %123 = arith.addf %120, %122 : vector<8x256xf32>
    %cst_74 = arith.constant 0.000000e+00 : f32
    %124 = vector.broadcast %cst_74 : f32 to vector<8x256xf32>
    %125 = arith.subf %124, %123 : vector<8x256xf32>
    %126 = math.exp %125 : vector<8x256xf32>
    %cst_75 = arith.constant 1.000000e+00 : f32
    %127 = vector.broadcast %cst_75 : f32 to vector<8x256xf32>
    %128 = arith.addf %127, %126 : vector<8x256xf32>
    %129 = tpu.reciprocal %128 {approx = true} : vector<8x256xf32> -> vector<8x256xf32>
    %130 = arith.mulf %123, %129 : vector<8x256xf32>
    %c0_76 = arith.constant 0 : index
    %c0_77 = arith.constant 0 : index
    %131 = vector.load %arg9[%c0_76, %c0_77] : memref<8x8xbf16, #tpu.memory_space<vmem>>, vector<8x8xbf16>
    %132 = arith.truncf %130 : vector<8x256xf32> to vector<8x256xbf16>
    %cst_78 = arith.constant dense<0.000000e+00> : vector<8x256xf32>
    %133 = tpu.matmul %131, %132, %cst_78 {dimension_numbers = #tpu.dot_dimension_numbers<[1], [0], [0], [1], [0, 0, 1, 1], [], []>} : vector<8x8xbf16>, vector<8x256xbf16>, vector<8x256xf32> -> vector<8x256xf32>
    %c0_79 = arith.constant 0 : index
    %c0_80 = arith.constant 0 : index
    %134 = vector.load %arg10[%c0_79, %c0_80] : memref<8x1xf32, #tpu.memory_space<vmem>>, vector<8x1xf32>
    %135 = vector.broadcast %134 : vector<8x1xf32> to vector<8x256xf32>
    %136 = arith.addf %133, %135 : vector<8x256xf32>
    %cst_81 = arith.constant 0.000000e+00 : f32
    %137 = vector.broadcast %cst_81 : f32 to vector<8x256xf32>
    %138 = arith.subf %137, %136 : vector<8x256xf32>
    %139 = math.exp %138 : vector<8x256xf32>
    %cst_82 = arith.constant 1.000000e+00 : f32
    %140 = vector.broadcast %cst_82 : f32 to vector<8x256xf32>
    %141 = arith.addf %140, %139 : vector<8x256xf32>
    %142 = tpu.reciprocal %141 {approx = true} : vector<8x256xf32> -> vector<8x256xf32>
    %143 = arith.mulf %136, %142 : vector<8x256xf32>
    %c0_83 = arith.constant 0 : index
    %c0_84 = arith.constant 0 : index
    %c0_85 = arith.constant 0 : index
    %144 = vector.load %arg11[%c0_83, %c0_84, %c0_85] : memref<1x8x256xf32, #tpu.memory_space<vmem>>, vector<1x8x256xf32>
    %145 = vector.shape_cast %144 : vector<1x8x256xf32> to vector<8x256xf32>
    %146 = vector.shape_cast %143 : vector<8x256xf32> to vector<1x8x256xf32>
    tpu.vector_store %arg11[%c0_83, %c0_84, %c0_85], %146 {strides = array<i32>} : memref<1x8x256xf32, #tpu.memory_space<vmem>>, vector<1x8x256xf32>,
    return
  }
  func.func @transform_0(%arg0: i32) -> (i32, i32, i32) {
    %c0_i32 = arith.constant 0 : i32
    %c0_i32_0 = arith.constant 0 : i32
    %c0_i32_1 = arith.constant 0 : i32
    return %arg0, %c0_i32, %c0_i32_0 : i32, i32, i32
  }
  func.func @transform_1(%arg0: i32) -> (i32, i32, i32) {
    %c0_i32 = arith.constant 0 : i32
    %c0_i32_0 = arith.constant 0 : i32
    %c0_i32_1 = arith.constant 0 : i32
    %c0_i32_2 = arith.constant 0 : i32
    return %c0_i32, %c0_i32_0, %c0_i32_1 : i32, i32, i32
  }
  func.func @transform_2(%arg0: i32) -> (i32, i32) {
    %c0_i32 = arith.constant 0 : i32
    %c0_i32_0 = arith.constant 0 : i32
    %c0_i32_1 = arith.constant 0 : i32
    return %c0_i32, %c0_i32_0 : i32, i32
  }
  func.func @transform_3(%arg0: i32) -> (i32, i32) {
    %c0_i32 = arith.constant 0 : i32
    %c0_i32_0 = arith.constant 0 : i32
    %c0_i32_1 = arith.constant 0 : i32
    return %c0_i32, %c0_i32_0 : i32, i32
  }
  func.func @transform_4(%arg0: i32) -> (i32, i32) {
    %c0_i32 = arith.constant 0 : i32
    %c0_i32_0 = arith.constant 0 : i32
    %c0_i32_1 = arith.constant 0 : i32
    return %c0_i32, %c0_i32_0 : i32, i32
  }
  func.func @transform_5(%arg0: i32) -> (i32, i32) {
    %c0_i32 = arith.constant 0 : i32
    %c0_i32_0 = arith.constant 0 : i32
    %c0_i32_1 = arith.constant 0 : i32
    return %c0_i32, %c0_i32_0 : i32, i32
  }
  func.func @transform_6(%arg0: i32) -> (i32, i32) {
    %c0_i32 = arith.constant 0 : i32
    %c0_i32_0 = arith.constant 0 : i32
    %c0_i32_1 = arith.constant 0 : i32
    return %c0_i32, %c0_i32_0 : i32, i32
  }
  func.func @transform_7(%arg0: i32) -> (i32, i32) {
    %c0_i32 = arith.constant 0 : i32
    %c0_i32_0 = arith.constant 0 : i32
    %c0_i32_1 = arith.constant 0 : i32
    return %c0_i32, %c0_i32_0 : i32, i32
  }
  func.func @transform_8(%arg0: i32) -> (i32, i32) {
    %c0_i32 = arith.constant 0 : i32
    %c0_i32_0 = arith.constant 0 : i32
    %c0_i32_1 = arith.constant 0 : i32
    return %c0_i32, %c0_i32_0 : i32, i32
  }
  func.func @transform_9(%arg0: i32) -> (i32, i32) {
    %c0_i32 = arith.constant 0 : i32
    %c0_i32_0 = arith.constant 0 : i32
    %c0_i32_1 = arith.constant 0 : i32
    return %c0_i32, %c0_i32_0 : i32, i32
  }
  func.func @transform_10(%arg0: i32) -> (i32, i32, i32) {
    %c0_i32 = arith.constant 0 : i32
    %c0_i32_0 = arith.constant 0 : i32
    %c0_i32_1 = arith.constant 0 : i32
    return %arg0, %c0_i32, %c0_i32_0 : i32, i32, i32
  }
}

</mosaic_0001>

<llo_original>
// kernel: esp_serial_forward.1
$region0: #{esp_serial_forward.1}
  #allocation0 [shape = 'u32[]', space=smem, size = 0x4, offset = 0x4, fixed_abs, tag = 'smem constant byte address 0x4 - core index']
  #allocation1 [shape = 'u32[144,128]{1,0:T(1,128)}', space=vmem, size = 0x12000, scoped, tag = 'internal scratch']
  %s0 = inlined_call_operand.vmem [shape: f32[2,4,256], index: 0, kind: input, shape index: {}]
  %s1 = inlined_call_operand.vmem [shape: f32[9,1,256], index: 1, kind: input, shape index: {}]
  %s2 = inlined_call_operand.vmem [shape: bf16[8,4], index: 2, kind: input, shape index: {}]
  %s3 = inlined_call_operand.vmem [shape: f32[8,1], index: 3, kind: input, shape index: {}]
  %s4 = inlined_call_operand.vmem [shape: bf16[8,72], index: 4, kind: input, shape index: {}]
  %s5 = inlined_call_operand.vmem [shape: f32[8,1], index: 5, kind: input, shape index: {}]
  %s6 = inlined_call_operand.vmem [shape: bf16[8,72], index: 6, kind: input, shape index: {}]
  %s7 = inlined_call_operand.vmem [shape: f32[8,1], index: 7, kind: input, shape index: {}]
  %s8 = inlined_call_operand.vmem [shape: bf16[8,8], index: 8, kind: input, shape index: {}]
  %s9 = inlined_call_operand.vmem [shape: f32[8,1], index: 9, kind: input, shape index: {}]
  %s10 = inlined_call_operand.vmem [shape: f32[2,8,256], index: 10, kind: output, shape index: {}]
  %s11 = sld [smem:[#allocation0]]
  $region73: #{esp_serial_forward.1} parent=0
    _
  %s13 = ssub.s32 1, %s11
  %s14 = scalar_select 0, %s13, %s11
  loop: start=0, step=1, limit=4
  $region2: #{esp_serial_forward.1} parent=0 // loop_pre_header
    _
  $region3: #{esp_serial_forward.1} parent=0 // loop_header
    %s16 = sphi 0, %s20
    %p17 = scmp.ge.s32.totalorder %s16, 4
    %s26 = sphi 0, %s28
    %s29 = sphi 0, %s26
    %s30 = sphi 0, %s29
    %s46 = sphi 0, %s30
    %s50 = sphi 0, %s50
    %s52 = sphi 0, %s50
    %s53 = sphi 0, %s52
    %s67 = sphi 0, %s53
    %s71 = sphi 0, %s71
    %s73 = sphi 0, %s71
    %s74 = sphi 0, %s73
    %s88 = sphi 0, %s74
    %s92 = sphi 0, %s92
    %s94 = sphi 0, %s92
    %s95 = sphi 0, %s94
    %s109 = sphi 0, %s95
    %s113 = sphi 0, %s113
    %s115 = sphi 0, %s113
    %s116 = sphi 0, %s115
    %s130 = sphi 0, %s116
    %s134 = sphi 0, %s134
    %s136 = sphi 0, %s134
    %s137 = sphi 0, %s136
    %s151 = sphi 0, %s137
    %s155 = sphi 0, %s155
    %s157 = sphi 0, %s155
    %s158 = sphi 0, %s157
    %s172 = sphi 0, %s158
    %s176 = sphi 0, %s176
    %s178 = sphi 0, %s176
    %s179 = sphi 0, %s178
    %s193 = sphi 0, %s179
    %s197 = sphi 0, %s197
    %s199 = sphi 0, %s197
    %s200 = sphi 0, %s199
    %s214 = sphi 0, %s200
    %s218 = sphi 0, %s218
    %s220 = sphi 0, %s218
    %s221 = sphi 0, %s220
    %s235 = sphi 0, %s221
    %s241 = sphi 0, %s243
    %s244 = sphi 0, %s241
    %s245 = sphi 0, %s244
    %s261 = sphi 0, %s245
  $region4: #{esp_serial_forward.1} parent=0 // loop_header_branch
    %19 = sbr.rel (%p17) target = $region8
  $region5: #{esp_serial_forward.1} parent=0 // loop_body
    %s21 = ssub.s32 %s16, 1
    %s22 = ssub.s32 %s16, 2
    %s23 = sadd.s32 %s16, 1
    %s24 = ssub.s32 %s16, %s23
    %p25 = scmp.eq.s32.totalorder %s24, 0
    %s27 = sadd.s32 %s26, 1
    %s28 = scalar_select %p25, %s26, %s27
    %p31 = pneg %p25
    %p32 = scmp.eq.s32.totalorder %s16, 1
    %p33 = por %p31, %p32
    %p34 = scmp.ne.s32.totalorder %s26, %s29
    %p35 = scmp.eq.s32.totalorder %s16, 0
    %p36 = por %p34, %p35
    %p37 = scmp.ne.s32.totalorder %s26, %s29
    %p38 = scmp.eq.s32.totalorder %s21, 1
    %p39 = por %p37, %p38
    %p40 = scmp.ne.s32.totalorder %s29, %s30
    %p41 = scmp.eq.s32.totalorder %s21, 0
    %p42 = por %p40, %p41
    %p43 = scmp.ne.s32.totalorder %s29, %s30
    %p44 = scmp.eq.s32.totalorder %s22, 1
    %p45 = por %p43, %p44
    %p47 = scmp.ne.s32.totalorder %s30, %s46
    %p48 = scmp.eq.s32.totalorder %s22, 0
    %p49 = por %p47, %p48
    %s51 = sadd.s32 %s50, 1
    %p54 = scmp.eq.s32.totalorder %s16, 1
    %p55 = scmp.ne.s32.totalorder %s50, %s52
    %p56 = scmp.eq.s32.totalorder %s16, 0
    %p57 = por %p55, %p56
    %p58 = scmp.ne.s32.totalorder %s50, %s52
    %p59 = scmp.eq.s32.totalorder %s21, 1
    %p60 = por %p58, %p59
    %p61 = scmp.ne.s32.totalorder %s52, %s53
    %p62 = scmp.eq.s32.totalorder %s21, 0
    %p63 = por %p61, %p62
    %p64 = scmp.ne.s32.totalorder %s52, %s53
    %p65 = scmp.eq.s32.totalorder %s22, 1
    %p66 = por %p64, %p65
    %p68 = scmp.ne.s32.totalorder %s53, %s67
    %p69 = scmp.eq.s32.totalorder %s22, 0
    %p70 = por %p68, %p69
    %s72 = sadd.s32 %s71, 1
    %p75 = scmp.eq.s32.totalorder %s16, 1
    %p76 = scmp.ne.s32.totalorder %s71, %s73
    %p77 = scmp.eq.s32.totalorder %s16, 0
    %p78 = por %p76, %p77
    %p79 = scmp.ne.s32.totalorder %s71, %s73
    %p80 = scmp.eq.s32.totalorder %s21, 1
    %p81 = por %p79, %p80
    %p82 = scmp.ne.s32.totalorder %s73, %s74
    %p83 = scmp.eq.s32.totalorder %s21, 0
    %p84 = por %p82, %p83
    %p85 = scmp.ne.s32.totalorder %s73, %s74
    %p86 = scmp.eq.s32.totalorder %s22, 1
    %p87 = por %p85, %p86
    %p89 = scmp.ne.s32.totalorder %s74, %s88
    %p90 = scmp.eq.s32.totalorder %s22, 0
    %p91 = por %p89, %p90
    %s93 = sadd.s32 %s92, 1
    %p96 = scmp.eq.s32.totalorder %s16, 1
    %p97 = scmp.ne.s32.totalorder %s92, %s94
    %p98 = scmp.eq.s32.totalorder %s16, 0
    %p99 = por %p97, %p98
    %p100 = scmp.ne.s32.totalorder %s92, %s94
    %p101 = scmp.eq.s32.totalorder %s21, 1
    %p102 = por %p100, %p101
    %p103 = scmp.ne.s32.totalorder %s94, %s95
    %p104 = scmp.eq.s32.totalorder %s21, 0
    %p105 = por %p103, %p104
    %p106 = scmp.ne.s32.totalorder %s94, %s95
    %p107 = scmp.eq.s32.totalorder %s22, 1
    %p108 = por %p106, %p107
    %p110 = scmp.ne.s32.totalorder %s95, %s109
    %p111 = scmp.eq.s32.totalorder %s22, 0
    %p112 = por %p110, %p111
    %s114 = sadd.s32 %s113, 1
    %p117 = scmp.eq.s32.totalorder %s16, 1
    %p118 = scmp.ne.s32.totalorder %s113, %s115
    %p119 = scmp.eq.s32.totalorder %s16, 0
    %p120 = por %p118, %p119
    %p121 = scmp.ne.s32.totalorder %s113, %s115
    %p122 = scmp.eq.s32.totalorder %s21, 1
    %p123 = por %p121, %p122
    %p124 = scmp.ne.s32.totalorder %s115, %s116
    %p125 = scmp.eq.s32.totalorder %s21, 0
    %p126 = por %p124, %p125
    %p127 = scmp.ne.s32.totalorder %s115, %s116
    %p128 = scmp.eq.s32.totalorder %s22, 1
    %p129 = por %p127, %p128
    %p131 = scmp.ne.s32.totalorder %s116, %s130
    %p132 = scmp.eq.s32.totalorder %s22, 0
    %p133 = por %p131, %p132
    %s135 = sadd.s32 %s134, 1
    %p138 = scmp.eq.s32.totalorder %s16, 1
    %p139 = scmp.ne.s32.totalorder %s134, %s136
    %p140 = scmp.eq.s32.totalorder %s16, 0
    %p141 = por %p139, %p140
    %p142 = scmp.ne.s32.totalorder %s134, %s136
    %p143 = scmp.eq.s32.totalorder %s21, 1
    %p144 = por %p142, %p143
    %p145 = scmp.ne.s32.totalorder %s136, %s137
    %p146 = scmp.eq.s32.totalorder %s21, 0
    %p147 = por %p145, %p146
    %p148 = scmp.ne.s32.totalorder %s136, %s137
    %p149 = scmp.eq.s32.totalorder %s22, 1
    %p150 = por %p148, %p149
    %p152 = scmp.ne.s32.totalorder %s137, %s151
    %p153 = scmp.eq.s32.totalorder %s22, 0
    %p154 = por %p152, %p153
    %s156 = sadd.s32 %s155, 1
    %p159 = scmp.eq.s32.totalorder %s16, 1
    %p160 = scmp.ne.s32.totalorder %s155, %s157
    %p161 = scmp.eq.s32.totalorder %s16, 0
    %p162 = por %p160, %p161
    %p163 = scmp.ne.s32.totalorder %s155, %s157
    %p164 = scmp.eq.s32.totalorder %s21, 1
    %p165 = por %p163, %p164
    %p166 = scmp.ne.s32.totalorder %s157, %s158
    %p167 = scmp.eq.s32.totalorder %s21, 0
    %p168 = por %p166, %p167
    %p169 = scmp.ne.s32.totalorder %s157, %s158
    %p170 = scmp.eq.s32.totalorder %s22, 1
    %p171 = por %p169, %p170
    %p173 = scmp.ne.s32.totalorder %s158, %s172
    %p174 = scmp.eq.s32.totalorder %s22, 0
    %p175 = por %p173, %p174
    %s177 = sadd.s32 %s176, 1
    %p180 = scmp.eq.s32.totalorder %s16, 1
    %p181 = scmp.ne.s32.totalorder %s176, %s178
    %p182 = scmp.eq.s32.totalorder %s16, 0
    %p183 = por %p181, %p182
    %p184 = scmp.ne.s32.totalorder %s176, %s178
    %p185 = scmp.eq.s32.totalorder %s21, 1
    %p186 = por %p184, %p185
    %p187 = scmp.ne.s32.totalorder %s178, %s179
    %p188 = scmp.eq.s32.totalorder %s21, 0
    %p189 = por %p187, %p188
    %p190 = scmp.ne.s32.totalorder %s178, %s179
    %p191 = scmp.eq.s32.totalorder %s22, 1
    %p192 = por %p190, %p191
    %p194 = scmp.ne.s32.totalorder %s179, %s193
    %p195 = scmp.eq.s32.totalorder %s22, 0
    %p196 = por %p194, %p195
    %s198 = sadd.s32 %s197, 1
    %p201 = scmp.eq.s32.totalorder %s16, 1
    %p202 = scmp.ne.s32.totalorder %s197, %s199
    %p203 = scmp.eq.s32.totalorder %s16, 0
    %p204 = por %p202, %p203
    %p205 = scmp.ne.s32.totalorder %s197, %s199
    %p206 = scmp.eq.s32.totalorder %s21, 1
    %p207 = por %p205, %p206
    %p208 = scmp.ne.s32.totalorder %s199, %s200
    %p209 = scmp.eq.s32.totalorder %s21, 0
    %p210 = por %p208, %p209
    %p211 = scmp.ne.s32.totalorder %s199, %s200
    %p212 = scmp.eq.s32.totalorder %s22, 1
    %p213 = por %p211, %p212
    %p215 = scmp.ne.s32.totalorder %s200, %s214
    %p216 = scmp.eq.s32.totalorder %s22, 0
    %p217 = por %p215, %p216
    %s219 = sadd.s32 %s218, 1
    %p222 = scmp.eq.s32.totalorder %s16, 1
    %p223 = scmp.ne.s32.totalorder %s218, %s220
    %p224 = scmp.eq.s32.totalorder %s16, 0
    %p225 = por %p223, %p224
    %p226 = scmp.ne.s32.totalorder %s218, %s220
    %p227 = scmp.eq.s32.totalorder %s21, 1
    %p228 = por %p226, %p227
    %p229 = scmp.ne.s32.totalorder %s220, %s221
    %p230 = scmp.eq.s32.totalorder %s21, 0
    %p231 = por %p229, %p230
    %p232 = scmp.ne.s32.totalorder %s220, %s221
    %p233 = scmp.eq.s32.totalorder %s22, 1
    %p234 = por %p232, %p233
    %p236 = scmp.ne.s32.totalorder %s221, %s235
    %p237 = scmp.eq.s32.totalorder %s22, 0
    %p238 = por %p236, %p237
    %s239 = ssub.s32 %s16, %s23
    %p240 = scmp.eq.s32.totalorder %s239, 0
    %s242 = sadd.s32 %s241, 1
    %s243 = scalar_select %p240, %s241, %s242
    %p246 = pneg %p240
    %p247 = scmp.eq.s32.totalorder %s16, 1
    %p248 = por %p246, %p247
    %p249 = scmp.ne.s32.totalorder %s241, %s244
    %p250 = scmp.eq.s32.totalorder %s16, 0
    %p251 = por %p249, %p250
    %p252 = scmp.ne.s32.totalorder %s241, %s244
    %p253 = scmp.eq.s32.totalorder %s21, 1
    %p254 = por %p252, %p253
    %p255 = scmp.ne.s32.totalorder %s244, %s245
    %p256 = scmp.eq.s32.totalorder %s21, 0
    %p257 = por %p255, %p256
    %p258 = scmp.ne.s32.totalorder %s244, %s245
    %p259 = scmp.eq.s32.totalorder %s22, 1
    %p260 = por %p258, %p259
    %p262 = scmp.ne.s32.totalorder %s245, %s261
    %p263 = scmp.eq.s32.totalorder %s22, 0
    %p264 = por %p262, %p263
    %p265 = scmp.le.s32.totalorder 1, %s16
    %p266 = scmp.lt.s32.totalorder %s16, 3
    %p267 = pnand %p265, %p266
    %p268 = pneg %p267
    // Predicated region
    $region9: #{esp_serial_forward.1} parent=5 // pred_check
      _
    $region10: #{esp_serial_forward.1} parent=5 // pred_check_branch
      %270 = sbr.rel (%p267) target = $region12
    $region11: #{esp_serial_forward.1} parent=5 // pred_region
      %s271 = ssub.s32 %s16, 1
      // Predicated region
      $region13: #{esp_serial_forward.1} parent=11 // pred_check
        %p272 = pneg %p63
      $region14: #{esp_serial_forward.1} parent=11 // pred_check_branch
        %274 = sbr.rel (%p272) target = $region16
      $region15: #{esp_serial_forward.1} parent=11 // pred_region
        _
      $region16: #{esp_serial_forward.1} parent=11 // pred_fallthru
        _
      // Predicated region
      $region17: #{esp_serial_forward.1} parent=11 // pred_check
        %p275 = pneg %p84
      $region18: #{esp_serial_forward.1} parent=11 // pred_check_branch
        %277 = sbr.rel (%p275) target = $region20
      $region19: #{esp_serial_forward.1} parent=11 // pred_region
        _
      $region20: #{esp_serial_forward.1} parent=11 // pred_fallthru
        _
      // Predicated region
      $region21: #{esp_serial_forward.1} parent=11 // pred_check
        %p278 = pneg %p105
      $region22: #{esp_serial_forward.1} parent=11 // pred_check_branch
        %280 = sbr.rel (%p278) target = $region24
      $region23: #{esp_serial_forward.1} parent=11 // pred_region
        _
      $region24: #{esp_serial_forward.1} parent=11 // pred_fallthru
        _
      // Predicated region
      $region25: #{esp_serial_forward.1} parent=11 // pred_check
        %p281 = pneg %p126
      $region26: #{esp_serial_forward.1} parent=11 // pred_check_branch
        %283 = sbr.rel (%p281) target = $region28
      $region27: #{esp_serial_forward.1} parent=11 // pred_region
        _
      $region28: #{esp_serial_forward.1} parent=11 // pred_fallthru
        _
      // Predicated region
      $region29: #{esp_serial_forward.1} parent=11 // pred_check
        %p284 = pneg %p147
      $region30: #{esp_serial_forward.1} parent=11 // pred_check_branch
        %286 = sbr.rel (%p284) target = $region32
      $region31: #{esp_serial_forward.1} parent=11 // pred_region
        _
      $region32: #{esp_serial_forward.1} parent=11 // pred_fallthru
        _
      // Predicated region
      $region33: #{esp_serial_forward.1} parent=11 // pred_check
        %p287 = pneg %p168
      $region34: #{esp_serial_forward.1} parent=11 // pred_check_branch
        %289 = sbr.rel (%p287) target = $region36
      $region35: #{esp_serial_forward.1} parent=11 // pred_region
        _
      $region36: #{esp_serial_forward.1} parent=11 // pred_fallthru
        _
      // Predicated region
      $region37: #{esp_serial_forward.1} parent=11 // pred_check
        %p290 = pneg %p189
      $region38: #{esp_serial_forward.1} parent=11 // pred_check_branch
        %292 = sbr.rel (%p290) target = $region40
      $region39: #{esp_serial_forward.1} parent=11 // pred_region
        _
      $region40: #{esp_serial_forward.1} parent=11 // pred_fallthru
        _
      // Predicated region
      $region41: #{esp_serial_forward.1} parent=11 // pred_check
        %p293 = pneg %p210
      $region42: #{esp_serial_forward.1} parent=11 // pred_check_branch
        %295 = sbr.rel (%p293) target = $region44
      $region43: #{esp_serial_forward.1} parent=11 // pred_region
        _
      $region44: #{esp_serial_forward.1} parent=11 // pred_fallthru
        _
      // Predicated region
      $region45: #{esp_serial_forward.1} parent=11 // pred_check
        %p296 = pneg %p231
      $region46: #{esp_serial_forward.1} parent=11 // pred_check_branch
        %298 = sbr.rel (%p296) target = $region48
      $region47: #{esp_serial_forward.1} parent=11 // pred_region
        _
      $region48: #{esp_serial_forward.1} parent=11 // pred_fallthru
        _
    $region12: #{esp_serial_forward.1} parent=5 // pred_fallthru
      _
    %p299 = scmp.lt.s32.totalorder %s16, 2
    // Predicated region
    $region49: #{esp_serial_forward.1} parent=5 // pred_check
      %p300 = pneg %p299
    $region50: #{esp_serial_forward.1} parent=5 // pred_check_branch
      %302 = sbr.rel (%p300) target = $region52
    $region51: #{esp_serial_forward.1} parent=5 // pred_region
      // Predicated region
      $region53: #{esp_serial_forward.1} parent=51 // pred_check
        %p303 = pneg %p36
      $region54: #{esp_serial_forward.1} parent=51 // pred_check_branch
        %305 = sbr.rel (%p303) target = $region56
      $region55: #{esp_serial_forward.1} parent=51 // pred_region
        %p306 = scmp.lt.s32.totalorder %s16, 1
        %s307 = scalar_select %p306, %s16, 1
        %s308 = smul.addr %s307, 2
        %s309 = smul.addr %s308, 4
        %s310 = scalar_lea.vmem %s0, %s309
      $region56: #{esp_serial_forward.1} parent=51 // pred_fallthru
        _
    $region52: #{esp_serial_forward.1} parent=5 // pred_fallthru
      _
    %p311 = scmp.le.s32.totalorder 1, %s16
    %p312 = scmp.lt.s32.totalorder %s16, 3
    %p313 = pnand %p311, %p312
    %p314 = pneg %p313
    // Predicated region
    $region57: #{esp_serial_forward.1} parent=5 // pred_check
      _
    $region58: #{esp_serial_forward.1} parent=5 // pred_check_branch
      %316 = sbr.rel (%p313) target = $region60
    $region59: #{esp_serial_forward.1} parent=5 // pred_region
      %s317 = ssub.s32 %s16, 1
      %p318 = scmp.lt.s32.totalorder %s21, 1
      %s319 = scalar_select %p318, %s21, 1
      %s320 = smul.addr %s319, 2
      %s321 = smul.addr %s320, 4
      %s322 = scalar_lea.vmem %s0, %s321
      %p323 = pneg %p42
      %p324 = pneg %p39
      %p325 = pneg %p63
      %p326 = pneg %p60
      %p327 = pneg %p84
      %p328 = pneg %p81
      %p329 = pneg %p105
      %p330 = pneg %p102
      %p331 = pneg %p126
      %p332 = pneg %p123
      %p333 = pneg %p147
      %p334 = pneg %p144
      %p335 = pneg %p168
      %p336 = pneg %p165
      %p337 = pneg %p189
      %p338 = pneg %p186
      %p339 = pneg %p210
      %p340 = pneg %p207
      %p341 = pneg %p231
      %p342 = pneg %p228
      %p343 = pneg %p257
      %p344 = pneg %p254
      %p345 = scmp.lt.s32.totalorder %s21, 1
      %s346 = scalar_select %p345, %s21, 1
      %s347 = smul.addr %s346, 2
      %s348 = smul.addr %s347, 8
      %s349 = scalar_lea.vmem %s10, %s348
      %p350 = scmp.lt.s32.totalorder %s21, 1
      %s351 = scalar_select %p350, %s21, 1
      %s352 = smul.addr %s351, 2
      %s353 = smul.addr %s352, 4
      %s354 = scalar_lea.vmem %s0, %s353
      %p355 = scmp.lt.s32.totalorder %s21, 1
      %s356 = scalar_select %p355, %s21, 1
      %s357 = smul.addr %s356, 2
      %s358 = smul.addr %s357, 8
      %s359 = scalar_lea.vmem %s10, %s358
      %v361 = vld [vmem:[%s354] sm:$0xff]
      %v363 = vcombine.high %v361, %v361
      %v365 = vpack.c.bf16 %v361, %v361
      %v366 = vpack.c.bf16 %v363, %v363
      %v367 = vld [vmem:[%s2] sm:$0xf]
      %v368 = vld [vmem:[%s3] sm:$0xff]
      %370 = vset.pattern.permute.xlu0 0
      %371 = vperm.xlu0 %370, %v368
      %v372 = vpop.permute.xlu0 %371
      %vm374 = vcmask 31744
      %v376 = vsel %vm374, %v367, 0
      %vm378 = vcmask 1041408
      %v380 = vsel %vm378, %v365, 0
      %v383 = vsel %vm378, %v366, 0
      %385 = vmatprep.subr.bf16.mxu0 0
      %386 = vmatpush1.bf16.msra.mxu0 0
      %387 = vmatprep.subr.bf16.mxu0 0
      %388 = vmatpush1.bf16.msra.mxu0 0
      %389 = vmatprep.subr.bf16.mxu0 0
      %390 = vmatpush1.bf16.msra.mxu0 0
      %391 = vmatprep.subr.bf16.mxu0 0
      %392 = vmatpush1.bf16.msra.mxu0 0
      %393 = vmatprep.subr.bf16.mxu0 0
      %394 = vmatpush1.bf16.msra.mxu0 0
      %395 = vmatprep.subr.bf16.mxu0 0
      %396 = vmatpush1.bf16.msra.mxu0 0
      %397 = vmatprep.subr.bf16.mxu0 0
      %398 = vmatpush1.bf16.msra.mxu0 0
      %399 = vmatprep.subr.bf16.mxu0 %v383
      %400 = vmatpush1.bf16.msra.mxu0 %v380
      %401 = vmatprep.subr.bf16.mxu0 0
      %402 = vmatpush2.bf16.msra.mxu0 0
      %403 = vmatprep.subr.bf16.mxu0 0
      %404 = vmatpush2.bf16.msra.mxu0 0
      %405 = vmatprep.subr.bf16.mxu0 0
      %406 = vmatpush2.bf16.msra.mxu0 0
      %407 = vmatprep.subr.bf16.mxu0 0
      %408 = vmatpush2.bf16.msra.mxu0 0
      %409 = vmatprep.subr.bf16.mxu0 0
      %410 = vmatpush2.bf16.msra.mxu0 0
      %411 = vmatprep.subr.bf16.mxu0 0
      %412 = vmatpush2.bf16.msra.mxu0 0
      %413 = vmatprep.subr.bf16.mxu0 0
      %414 = vmatpush2.bf16.msra.mxu0 0
      %415 = vmatprep.subr.bf16.mxu0 0
      %416 = vmatpush2.bf16.msra.mxu0 0
      %417 = vmatprep.mubr.bf16.mxu0 0
      %418 = vmatmul.mubr.bf16.gmra.mxu0 %v376
      %v419 = vpop.f32.mrf.mxu0
      %v420 = vadd.f32 %v372, %v419
      %v421 = vpop.f32.mrf.mxu0
      %v422 = vadd.f32 %v372, %v421
      %v423 = vpop.f32.mrf.mxu0
      %v424 = vpop.f32.mrf.mxu0
      %425 = vdwg.mxu0
      %v426 = vsub.f32 0.0, %v420
      %v427 = vsub.f32 0.0, %v422
      %v428 = vmul.f32 %v426, 1.442695
      %v429 = vpow.pop %v428
      %v430 = vmul.f32 %v427, 1.442695
      %v431 = vpow.pop %v430
      %v432 = vadd.f32 %v429, 1.0
      %v433 = vadd.f32 %v431, 1.0
      %v434 = vrcp.pop %v432
      %v435 = vrcp.pop %v433
      %v436 = vmul.f32 %v420, %v434
      %v437 = vmul.f32 %v422, %v435
      %438 = vrot.lane.b32.xlu0 %v436, 17
      %v439 = vpop.permute.xlu0 %438
      %440 = vrot.lane.b32.xlu0 %v437, 17
      %v441 = vpop.permute.xlu0 %440
      %v442 = vlaneseq
      %v443 = vand.u32 %v442, 127
      %vm444 = vcmp.lt.s32.totalorder %v443, 17
      %v445 = vsel %vm444, %v439, %v441
      %v446 = vsel %vm444, %v441, %v439
      %v447 = vld [vmem:[%s1] sm:$0x3]
      %v449 = vlaneseq
      %v450 = vshrl.u32 %v449, 7
      %v451 = vsub.s32 0, %v450
      %v452 = vrot.slane %v447, %v451
      %v453 = vlaneseq
      %v454 = vshrl.u32 %v453, 7
      %v455 = vsub.s32 1, %v454
      %v456 = vrot.slane %v447, %v455
      %v459 = vmul.f32 %v446, %v452
      %v460 = vmul.f32 %v445, %v456
      %461 = vrot.lane.b32.xlu0 %v436, 16
      %v462 = vpop.permute.xlu0 %461
      %463 = vrot.lane.b32.xlu0 %v437, 16
      %v464 = vpop.permute.xlu0 %463
      %vm465 = vcmp.lt.s32.totalorder %v443, 16
      %v466 = vsel %vm465, %v462, %v464
      %v467 = vsel %vm465, %v464, %v462
      %s468 = scalar_lea.vmem %s1, 2
      %v469 = vld [vmem:[%s468] sm:$0x3]
      %v471 = vlaneseq
      %v472 = vshrl.u32 %v471, 7
      %v473 = vsub.s32 0, %v472
      %v474 = vrot.slane %v469, %v473
      %v475 = vlaneseq
      %v476 = vshrl.u32 %v475, 7
      %v477 = vsub.s32 1, %v476
      %v478 = vrot.slane %v469, %v477
      %v481 = vmul.f32 %v467, %v474
      %v482 = vmul.f32 %v466, %v478
      %483 = vrot.lane.b32.xlu0 %v436, 15
      %v484 = vpop.permute.xlu0 %483
      %485 = vrot.lane.b32.xlu0 %v437, 15
      %v486 = vpop.permute.xlu0 %485
      %vm487 = vcmp.lt.s32.totalorder %v443, 15
      %v488 = vsel %vm487, %v484, %v486
      %v489 = vsel %vm487, %v486, %v484
      %s490 = scalar_lea.vmem %s1, 4
      %v491 = vld [vmem:[%s490] sm:$0x3]
      %v493 = vlaneseq
      %v494 = vshrl.u32 %v493, 7
      %v495 = vsub.s32 0, %v494
      %v496 = vrot.slane %v491, %v495
      %v497 = vlaneseq
      %v498 = vshrl.u32 %v497, 7
      %v499 = vsub.s32 1, %v498
      %v500 = vrot.slane %v491, %v499
      %v503 = vmul.f32 %v489, %v496
      %v504 = vmul.f32 %v488, %v500
      %505 = vrot.lane.b32.xlu0 %v436, 1
      %v506 = vpop.permute.xlu0 %505
      %507 = vrot.lane.b32.xlu0 %v437, 1
      %v508 = vpop.permute.xlu0 %507
      %vm509 = vcmp.lt.s32.totalorder %v443, 1
      %v510 = vsel %vm509, %v506, %v508
      %v511 = vsel %vm509, %v508, %v506
      %s512 = scalar_lea.vmem %s1, 6
      %v513 = vld [vmem:[%s512] sm:$0x3]
      %v515 = vlaneseq
      %v516 = vshrl.u32 %v515, 7
      %v517 = vsub.s32 0, %v516
      %v518 = vrot.slane %v513, %v517
      %v519 = vlaneseq
      %v520 = vshrl.u32 %v519, 7
      %v521 = vsub.s32 1, %v520
      %v522 = vrot.slane %v513, %v521
      %v525 = vmul.f32 %v511, %v518
      %v526 = vmul.f32 %v510, %v522
      %s527 = scalar_lea.vmem %s1, 8
      %v528 = vld [vmem:[%s527] sm:$0x3]
      %v530 = vlaneseq
      %v531 = vshrl.u32 %v530, 7
      %v532 = vsub.s32 0, %v531
      %v533 = vrot.slane %v528, %v532
      %v534 = vlaneseq
      %v535 = vshrl.u32 %v534, 7
      %v536 = vsub.s32 1, %v535
      %v537 = vrot.slane %v528, %v536
      %v540 = vmul.f32 %v436, %v533
      %v541 = vmul.f32 %v437, %v537
      %542 = vrot.lane.b32.xlu0 %v436, 127
      %v543 = vpop.permute.xlu0 %542
      %544 = vrot.lane.b32.xlu0 %v437, 127
      %v545 = vpop.permute.xlu0 %544
      %vm546 = vcmp.lt.s32.totalorder %v443, 127
      %v547 = vsel %vm546, %v543, %v545
      %v548 = vsel %vm546, %v545, %v543
      %s549 = scalar_lea.vmem %s1, 10
      %v550 = vld [vmem:[%s549] sm:$0x3]
      %v552 = vlaneseq
      %v553 = vshrl.u32 %v552, 7
      %v554 = vsub.s32 0, %v553
      %v555 = vrot.slane %v550, %v554
      %v556 = vlaneseq
      %v557 = vshrl.u32 %v556, 7
      %v558 = vsub.s32 1, %v557
      %v559 = vrot.slane %v550, %v558
      %v562 = vmul.f32 %v547, %v555
      %v563 = vmul.f32 %v548, %v559
      %564 = vrot.lane.b32.xlu0 %v436, 113
      %v565 = vpop.permute.xlu0 %564
      %566 = vrot.lane.b32.xlu0 %v437, 113
      %v567 = vpop.permute.xlu0 %566
      %vm568 = vcmp.lt.s32.totalorder %v443, 113
      %v569 = vsel %vm568, %v565, %v567
      %v570 = vsel %vm568, %v567, %v565
      %s571 = scalar_lea.vmem %s1, 12
      %v572 = vld [vmem:[%s571] sm:$0x3]
      %v574 = vlaneseq
      %v575 = vshrl.u32 %v574, 7
      %v576 = vsub.s32 0, %v575
      %v577 = vrot.slane %v572, %v576
      %v578 = vlaneseq
      %v579 = vshrl.u32 %v578, 7
      %v580 = vsub.s32 1, %v579
      %v581 = vrot.slane %v572, %v580
      %v584 = vmul.f32 %v569, %v577
      %v585 = vmul.f32 %v570, %v581
      %586 = vrot.lane.b32.xlu0 %v436, 112
      %v587 = vpop.permute.xlu0 %586
      %588 = vrot.lane.b32.xlu0 %v437, 112
      %v589 = vpop.permute.xlu0 %588
      %vm590 = vcmp.lt.s32.totalorder %v443, 112
      %v591 = vsel %vm590, %v587, %v589
      %v592 = vsel %vm590, %v589, %v587
      %s593 = scalar_lea.vmem %s1, 14
      %v594 = vld [vmem:[%s593] sm:$0x3]
      %v596 = vlaneseq
      %v597 = vshrl.u32 %v596, 7
      %v598 = vsub.s32 0, %v597
      %v599 = vrot.slane %v594, %v598
      %v600 = vlaneseq
      %v601 = vshrl.u32 %v600, 7
      %v602 = vsub.s32 1, %v601
      %v603 = vrot.slane %v594, %v602
      %v606 = vmul.f32 %v591, %v599
      %v607 = vmul.f32 %v592, %v603
      %608 = vrot.lane.b32.xlu0 %v436, 111
      %v609 = vpop.permute.xlu0 %608
      %610 = vrot.lane.b32.xlu0 %v437, 111
      %v611 = vpop.permute.xlu0 %610
      %vm612 = vcmp.lt.s32.totalorder %v443, 111
      %v613 = vsel %vm612, %v609, %v611
      %v614 = vsel %vm612, %v611, %v609
      %s615 = scalar_lea.vmem %s1, 16
      %v616 = vld [vmem:[%s615] sm:$0x3]
      %v618 = vlaneseq
      %v619 = vshrl.u32 %v618, 7
      %v620 = vsub.s32 0, %v619
      %v621 = vrot.slane %v616, %v620
      %v622 = vlaneseq
      %v623 = vshrl.u32 %v622, 7
      %v624 = vsub.s32 1, %v623
      %v625 = vrot.slane %v616, %v624
      %v628 = vmul.f32 %v613, %v621
      %v629 = vmul.f32 %v614, %v625
      %v630 = vpack.c.bf16 %v481, %v459
      %v631 = vpack.c.bf16 %v482, %v460
      %v632 = vpack.c.bf16 %v525, %v503
      %v633 = vpack.c.bf16 %v526, %v504
      %v634 = vpack.c.bf16 %v562, %v540
      %v635 = vpack.c.bf16 %v563, %v541
      %v636 = vpack.c.bf16 %v606, %v584
      %v637 = vpack.c.bf16 %v607, %v585
      %v638 = vpack.c.bf16 %v628, %v628
      %v639 = vpack.c.bf16 %v629, %v629
      %v640 = vld [vmem:[%s4] sm:$0xf]
      %v641 = vld [vmem:[%s5] sm:$0xff]
      %643 = vset.pattern.permute.xlu0 0
      %644 = vperm.xlu0 %643, %v641
      %v645 = vpop.permute.xlu0 %644
      %vm647 = vcmask 588800
      %v649 = vsel %vm647, %v640, 0
      %vm651 = vcmask 1043456
      %v653 = vsel %vm651, %v638, 0
      %v656 = vsel %vm651, %v639, 0
      %658 = vmatprep.subr.bf16.mxu0 0
      %659 = vmatpush1.bf16.msra.mxu0 0
      %660 = vmatprep.subr.bf16.mxu0 0
      %661 = vmatpush1.bf16.msra.mxu0 0
      %662 = vmatprep.subr.bf16.mxu0 0
      %663 = vmatpush1.bf16.msra.mxu0 0
      %664 = vmatprep.subr.bf16.mxu0 %v656
      %665 = vmatpush1.bf16.msra.mxu0 %v653
      %666 = vmatprep.subr.bf16.mxu0 %v637
      %667 = vmatpush1.bf16.msra.mxu0 %v636
      %668 = vmatprep.subr.bf16.mxu0 %v635
      %669 = vmatpush1.bf16.msra.mxu0 %v634
      %670 = vmatprep.subr.bf16.mxu0 %v633
      %671 = vmatpush1.bf16.msra.mxu0 %v632
      %672 = vmatprep.subr.bf16.mxu0 %v631
      %673 = vmatpush1.bf16.msra.mxu0 %v630
      %674 = vmatprep.subr.bf16.mxu0 0
      %675 = vmatpush2.bf16.msra.mxu0 0
      %676 = vmatprep.subr.bf16.mxu0 0
      %677 = vmatpush2.bf16.msra.mxu0 0
      %678 = vmatprep.subr.bf16.mxu0 0
      %679 = vmatpush2.bf16.msra.mxu0 0
      %680 = vmatprep.subr.bf16.mxu0 0
      %681 = vmatpush2.bf16.msra.mxu0 0
      %682 = vmatprep.subr.bf16.mxu0 0
      %683 = vmatpush2.bf16.msra.mxu0 0
      %684 = vmatprep.subr.bf16.mxu0 0
      %685 = vmatpush2.bf16.msra.mxu0 0
      %686 = vmatprep.subr.bf16.mxu0 0
      %687 = vmatpush2.bf16.msra.mxu0 0
      %688 = vmatprep.subr.bf16.mxu0 0
      %689 = vmatpush2.bf16.msra.mxu0 0
      %690 = vmatprep.mubr.bf16.mxu0 0
      %691 = vmatmul.mubr.bf16.gmra.mxu0 %v649
      %v692 = vpop.f32.mrf.mxu0
      %v693 = vadd.f32 %v645, %v692
      %v694 = vpop.f32.mrf.mxu0
      %v695 = vadd.f32 %v645, %v694
      %v696 = vpop.f32.mrf.mxu0
      %v697 = vpop.f32.mrf.mxu0
      %698 = vdwg.mxu0
      %v699 = vsub.f32 0.0, %v693
      %v700 = vsub.f32 0.0, %v695
      %v701 = vmul.f32 %v699, 1.442695
      %v702 = vpow.pop %v701
      %v703 = vmul.f32 %v700, 1.442695
      %v704 = vpow.pop %v703
      %v705 = vadd.f32 %v702, 1.0
      %v706 = vadd.f32 %v704, 1.0
      %v707 = vrcp.pop %v705
      %v708 = vrcp.pop %v706
      %v709 = vmul.f32 %v693, %v707
      %v710 = vmul.f32 %v695, %v708
      %711 = vrot.lane.b32.xlu0 %v709, 17
      %v712 = vpop.permute.xlu0 %711
      %713 = vrot.lane.b32.xlu0 %v710, 17
      %v714 = vpop.permute.xlu0 %713
      %v715 = vsel %vm444, %v712, %v714
      %v716 = vsel %vm444, %v714, %v712
      %v717 = vmul.f32 %v716, %v452
      %v718 = vmul.f32 %v715, %v456
      %719 = vrot.lane.b32.xlu0 %v709, 16
      %v720 = vpop.permute.xlu0 %719
      %721 = vrot.lane.b32.xlu0 %v710, 16
      %v722 = vpop.permute.xlu0 %721
      %v723 = vsel %vm465, %v720, %v722
      %v724 = vsel %vm465, %v722, %v720
      %v725 = vmul.f32 %v724, %v474
      %v726 = vmul.f32 %v723, %v478
      %727 = vrot.lane.b32.xlu0 %v709, 15
      %v728 = vpop.permute.xlu0 %727
      %729 = vrot.lane.b32.xlu0 %v710, 15
      %v730 = vpop.permute.xlu0 %729
      %v731 = vsel %vm487, %v728, %v730
      %v732 = vsel %vm487, %v730, %v728
      %v733 = vmul.f32 %v732, %v496
      %v734 = vmul.f32 %v731, %v500
      %735 = vrot.lane.b32.xlu0 %v709, 1
      %v736 = vpop.permute.xlu0 %735
      %737 = vrot.lane.b32.xlu0 %v710, 1
      %v738 = vpop.permute.xlu0 %737
      %v739 = vsel %vm509, %v736, %v738
      %v740 = vsel %vm509, %v738, %v736
      %v741 = vmul.f32 %v740, %v518
      %v742 = vmul.f32 %v739, %v522
      %v743 = vmul.f32 %v709, %v533
      %v744 = vmul.f32 %v710, %v537
      %745 = vrot.lane.b32.xlu0 %v709, 127
      %v746 = vpop.permute.xlu0 %745
      %747 = vrot.lane.b32.xlu0 %v710, 127
      %v748 = vpop.permute.xlu0 %747
      %v749 = vsel %vm546, %v746, %v748
      %v750 = vsel %vm546, %v748, %v746
      %v751 = vmul.f32 %v749, %v555
      %v752 = vmul.f32 %v750, %v559
      %753 = vrot.lane.b32.xlu0 %v709, 113
      %v754 = vpop.permute.xlu0 %753
      %755 = vrot.lane.b32.xlu0 %v710, 113
      %v756 = vpop.permute.xlu0 %755
      %v757 = vsel %vm568, %v754, %v756
      %v758 = vsel %vm568, %v756, %v754
      %v759 = vmul.f32 %v757, %v577
      %v760 = vmul.f32 %v758, %v581
      %761 = vrot.lane.b32.xlu0 %v709, 112
      %v762 = vpop.permute.xlu0 %761
      %763 = vrot.lane.b32.xlu0 %v710, 112
      %v764 = vpop.permute.xlu0 %763
      %v765 = vsel %vm590, %v762, %v764
      %v766 = vsel %vm590, %v764, %v762
      %v767 = vmul.f32 %v765, %v599
      %v768 = vmul.f32 %v766, %v603
      %769 = vrot.lane.b32.xlu0 %v709, 111
      %v770 = vpop.permute.xlu0 %769
      %771 = vrot.lane.b32.xlu0 %v710, 111
      %v772 = vpop.permute.xlu0 %771
      %v773 = vsel %vm612, %v770, %v772
      %v774 = vsel %vm612, %v772, %v770
      %v775 = vmul.f32 %v773, %v621
      %v776 = vmul.f32 %v774, %v625
      %v777 = vpack.c.bf16 %v725, %v717
      %v778 = vpack.c.bf16 %v726, %v718
      %v779 = vpack.c.bf16 %v741, %v733
      %v780 = vpack.c.bf16 %v742, %v734
      %v781 = vpack.c.bf16 %v751, %v743
      %v782 = vpack.c.bf16 %v752, %v744
      %v783 = vpack.c.bf16 %v767, %v759
      %v784 = vpack.c.bf16 %v768, %v760
      %v785 = vpack.c.bf16 %v775, %v775
      %v786 = vpack.c.bf16 %v776, %v776
      %v787 = vld [vmem:[%s6] sm:$0xf]
      %v788 = vld [vmem:[%s7] sm:$0xff]
      %790 = vset.pattern.permute.xlu0 0
      %791 = vperm.xlu0 %790, %v788
      %v792 = vpop.permute.xlu0 %791
      %v795 = vsel %vm647, %v787, 0
      %v798 = vsel %vm651, %v785, 0
      %v801 = vsel %vm651, %v786, 0
      %803 = vmatprep.subr.bf16.mxu0 0
      %804 = vmatpush1.bf16.msra.mxu0 0
      %805 = vmatprep.subr.bf16.mxu0 0
      %806 = vmatpush1.bf16.msra.mxu0 0
      %807 = vmatprep.subr.bf16.mxu0 0
      %808 = vmatpush1.bf16.msra.mxu0 0
      %809 = vmatprep.subr.bf16.mxu0 %v801
      %810 = vmatpush1.bf16.msra.mxu0 %v798
      %811 = vmatprep.subr.bf16.mxu0 %v784
      %812 = vmatpush1.bf16.msra.mxu0 %v783
      %813 = vmatprep.subr.bf16.mxu0 %v782
      %814 = vmatpush1.bf16.msra.mxu0 %v781
      %815 = vmatprep.subr.bf16.mxu0 %v780
      %816 = vmatpush1.bf16.msra.mxu0 %v779
      %817 = vmatprep.subr.bf16.mxu0 %v778
      %818 = vmatpush1.bf16.msra.mxu0 %v777
      %819 = vmatprep.subr.bf16.mxu0 0
      %820 = vmatpush2.bf16.msra.mxu0 0
      %821 = vmatprep.subr.bf16.mxu0 0
      %822 = vmatpush2.bf16.msra.mxu0 0
      %823 = vmatprep.subr.bf16.mxu0 0
      %824 = vmatpush2.bf16.msra.mxu0 0
      %825 = vmatprep.subr.bf16.mxu0 0
      %826 = vmatpush2.bf16.msra.mxu0 0
      %827 = vmatprep.subr.bf16.mxu0 0
      %828 = vmatpush2.bf16.msra.mxu0 0
      %829 = vmatprep.subr.bf16.mxu0 0
      %830 = vmatpush2.bf16.msra.mxu0 0
      %831 = vmatprep.subr.bf16.mxu0 0
      %832 = vmatpush2.bf16.msra.mxu0 0
      %833 = vmatprep.subr.bf16.mxu0 0
      %834 = vmatpush2.bf16.msra.mxu0 0
      %835 = vmatprep.mubr.bf16.mxu0 0
      %836 = vmatmul.mubr.bf16.gmra.mxu0 %v795
      %v837 = vpop.f32.mrf.mxu0
      %v838 = vadd.f32 %v792, %v837
      %v839 = vpop.f32.mrf.mxu0
      %v840 = vadd.f32 %v792, %v839
      %v841 = vpop.f32.mrf.mxu0
      %v842 = vpop.f32.mrf.mxu0
      %843 = vdwg.mxu0
      %v844 = vsub.f32 0.0, %v838
      %v845 = vsub.f32 0.0, %v840
      %v846 = vmul.f32 %v844, 1.442695
      %v847 = vpow.pop %v846
      %v848 = vmul.f32 %v845, 1.442695
      %v849 = vpow.pop %v848
      %v850 = vadd.f32 %v847, 1.0
      %v851 = vadd.f32 %v849, 1.0
      %v852 = vrcp.pop %v850
      %v853 = vrcp.pop %v851
      %v854 = vmul.f32 %v838, %v852
      %v855 = vmul.f32 %v840, %v853
      %v856 = vld [vmem:[%s8] sm:$0xf]
      %v857 = vpack.c.bf16 %v854, %v854
      %v858 = vpack.c.bf16 %v855, %v855
      %v859 = vld [vmem:[%s9] sm:$0xff]
      %861 = vset.pattern.permute.xlu0 0
      %862 = vperm.xlu0 %861, %v859
      %v863 = vpop.permute.xlu0 %862
      %vm865 = vcmask 64512
      %v867 = vsel %vm865, %v856, 0
      %v870 = vsel %vm651, %v857, 0
      %v873 = vsel %vm651, %v858, 0
      %875 = vmatprep.subr.bf16.mxu0 0
      %876 = vmatpush1.bf16.msra.mxu0 0
      %877 = vmatprep.subr.bf16.mxu0 0
      %878 = vmatpush1.bf16.msra.mxu0 0
      %879 = vmatprep.subr.bf16.mxu0 0
      %880 = vmatpush1.bf16.msra.mxu0 0
      %881 = vmatprep.subr.bf16.mxu0 0
      %882 = vmatpush1.bf16.msra.mxu0 0
      %883 = vmatprep.subr.bf16.mxu0 0
      %884 = vmatpush1.bf16.msra.mxu0 0
      %885 = vmatprep.subr.bf16.mxu0 0
      %886 = vmatpush1.bf16.msra.mxu0 0
      %887 = vmatprep.subr.bf16.mxu0 0
      %888 = vmatpush1.bf16.msra.mxu0 0
      %889 = vmatprep.subr.bf16.mxu0 %v873
      %890 = vmatpush1.bf16.msra.mxu0 %v870
      %891 = vmatprep.subr.bf16.mxu0 0
      %892 = vmatpush2.bf16.msra.mxu0 0
      %893 = vmatprep.subr.bf16.mxu0 0
      %894 = vmatpush2.bf16.msra.mxu0 0
      %895 = vmatprep.subr.bf16.mxu0 0
      %896 = vmatpush2.bf16.msra.mxu0 0
      %897 = vmatprep.subr.bf16.mxu0 0
      %898 = vmatpush2.bf16.msra.mxu0 0
      %899 = vmatprep.subr.bf16.mxu0 0
      %900 = vmatpush2.bf16.msra.mxu0 0
      %901 = vmatprep.subr.bf16.mxu0 0
      %902 = vmatpush2.bf16.msra.mxu0 0
      %903 = vmatprep.subr.bf16.mxu0 0
      %904 = vmatpush2.bf16.msra.mxu0 0
      %905 = vmatprep.subr.bf16.mxu0 0
      %906 = vmatpush2.bf16.msra.mxu0 0
      %907 = vmatprep.mubr.bf16.mxu0 0
      %908 = vmatmul.mubr.bf16.gmra.mxu0 %v867
      %v909 = vpop.f32.mrf.mxu0
      %v910 = vadd.f32 %v863, %v909
      %v911 = vpop.f32.mrf.mxu0
      %v912 = vadd.f32 %v863, %v911
      %v913 = vpop.f32.mrf.mxu0
      %v914 = vpop.f32.mrf.mxu0
      %915 = vdwg.mxu0
      %v916 = vsub.f32 0.0, %v910
      %v917 = vsub.f32 0.0, %v912
      %v918 = vmul.f32 %v916, 1.442695
      %v919 = vpow.pop %v918
      %v920 = vmul.f32 %v917, 1.442695
      %v921 = vpow.pop %v920
      %v922 = vadd.f32 %v919, 1.0
      %v923 = vadd.f32 %v921, 1.0
      %v924 = vrcp.pop %v922
      %v925 = vrcp.pop %v923
      %v926 = vmul.f32 %v910, %v924
      %v927 = vmul.f32 %v912, %v925
      %928 = vst [vmem:[%s359] sm:$0xff] %v926
      %929 = vst [vmem:[%s359 + $0x8] sm:$0xff] %v927
      %p930 = scmp.lt.s32.totalorder %s21, 1
      %s931 = scalar_select %p930, %s21, 1
      %s932 = smul.addr %s931, 2
      %s933 = smul.addr %s932, 8
      %s934 = scalar_lea.vmem %s10, %s933
      // Predicated region
      $region61: #{esp_serial_forward.1} parent=59 // pred_check
        %p935 = pneg %p254
      $region62: #{esp_serial_forward.1} parent=59 // pred_check_branch
        %937 = sbr.rel (%p935) target = $region64
      $region63: #{esp_serial_forward.1} parent=59 // pred_region
        _
      $region64: #{esp_serial_forward.1} parent=59 // pred_fallthru
        _
    $region60: #{esp_serial_forward.1} parent=5 // pred_fallthru
      _
    %p938 = scmp.le.s32.totalorder 2, %s16
    // Predicated region
    $region65: #{esp_serial_forward.1} parent=5 // pred_check
      %p939 = pneg %p938
    $region66: #{esp_serial_forward.1} parent=5 // pred_check_branch
      %941 = sbr.rel (%p939) target = $region68
    $region67: #{esp_serial_forward.1} parent=5 // pred_region
      %s942 = ssub.s32 %s16, 2
      // Predicated region
      $region69: #{esp_serial_forward.1} parent=67 // pred_check
        %p943 = pneg %p260
      $region70: #{esp_serial_forward.1} parent=67 // pred_check_branch
        %945 = sbr.rel (%p943) target = $region72
      $region71: #{esp_serial_forward.1} parent=67 // pred_region
        %p946 = scmp.lt.s32.totalorder %s22, 1
        %s947 = scalar_select %p946, %s22, 1
        %s948 = smul.addr %s947, 2
        %s949 = smul.addr %s948, 8
        %s950 = scalar_lea.vmem %s10, %s949
      $region72: #{esp_serial_forward.1} parent=67 // pred_fallthru
        _
    $region68: #{esp_serial_forward.1} parent=5 // pred_fallthru
      _
  $region6: #{esp_serial_forward.1} parent=0 // loop_footer
    %s20 = sadd.s32 1, %s16
  $region7: #{esp_serial_forward.1} parent=0 // loop_footer_branch
    %15 = sbr.rel target = $region3
  $region8: #{esp_serial_forward.1} parent=0 // loop_exit
    _

</llo_original>
